<compile_context>
chip_gen: v7x
topology: tpu7x:2x2x1
jax: 0.10.0
libtpu: 0.0.40
codegen_flags: <defaults>
</compile_context>

<pallas_src>
import functools

import jax
import jax.numpy as jnp
from jax.experimental import pallas as pl
from jax.experimental.pallas import tpu as pltpu


# ------------------------------- kernels -----------------------------------

def _se_single_pass_kernel(x_ref, w1t_ref, w2t_ref, o_ref):
    """One (Bt, C, HW) block per grid step: pool -> excite -> scale (1 pass over x)."""
    # squeeze: spatial sum with an f32 accumulator (1/HW is folded into w1t);
    # dtype= avoids materializing a full-block f32 copy of x.
    y = jnp.sum(x_ref[...], axis=-1, dtype=jnp.float32)                        # (Bt, C)
    # excitation: Linear -> ReLU -> Linear -> Sigmoid (tiny, off the HBM path)
    h = jnp.maximum(
        jnp.dot(y, w1t_ref[...], preferred_element_type=jnp.float32), 0.0)     # (Bt, Cr)
    s = jax.nn.sigmoid(
        jnp.dot(h, w2t_ref[...], preferred_element_type=jnp.float32))          # (Bt, C)
    # scale: multiply by the f32 gate and cast the product exactly once on store
    o_ref[...] = (x_ref[...] * s[:, :, None]).astype(o_ref.dtype)


def _se_pool_gate_kernel(x_ref, w1t_ref, w2t_ref, g_ref, acc_ref, *,
                         hw_total, hw_tile, needs_mask):
    """Two-phase path, phase 1: accumulate spatial sums per (b, c), emit the gate."""
    t = pl.program_id(1)

    @pl.when(t == 0)
    def _():
        acc_ref[...] = jnp.zeros_like(acc_ref)

    x = x_ref[...]                                                              # (1, C, hw_tile)
    if needs_mask:  # ragged last tile: zero out-of-range columns before the sum
        col = jax.lax.broadcasted_iota(jnp.int32, x.shape, 2) + t * hw_tile
        x = jnp.where(col < hw_total, x, jnp.zeros_like(x))
    acc_ref[...] += jnp.sum(x, axis=-1, dtype=jnp.float32)                      # (1, C)

    @pl.when(t == pl.num_programs(1) - 1)
    def _():
        y = acc_ref[...]                                                        # (1, C)
        h = jnp.maximum(
            jnp.dot(y, w1t_ref[...], preferred_element_type=jnp.float32), 0.0)
        s = jax.nn.sigmoid(
            jnp.dot(h, w2t_ref[...], preferred_element_type=jnp.float32))       # (1, C)
        g_ref[...] = s[:, :, None]                                              # (1, C, 1) f32


def _se_scale_kernel(x_ref, g_ref, o_ref):
    """Two-phase path, phase 2: scale each lane-dense (1, C, hw_tile) tile."""
    o_ref[...] = (x_ref[...] * g_ref[...]).astype(o_ref.dtype)                  # f32 gate broadcasts


# ------------------------------- helpers ------------------------------------

def _cdiv(a, b):
    return -(-a // b)


def _tpu_vmem_capacity_bytes():
    try:
        cap = getattr(pltpu.get_tpu_info(), "vmem_capacity_bytes", None)
        if cap:
            return int(cap)
    except Exception:
        pass
    return 64 << 20  # conservative default: v7x per-TensorCore VMEM


def _vmem_limit_bytes(vmem_cap, need_bytes):
    cap = vmem_cap * 3 // 4  # leave headroom for Mosaic internal scratch / weights
    return int(min(max(need_bytes + (2 << 20), 16 << 20), cap))


def _pick_batch_tile(B, per_image_bytes, max_block_bytes):
    """Largest batch tile that divides B and fits the block budget (or None)."""
    if per_image_bytes > max_block_bytes:
        return None
    bt = min(B, max(1, max_block_bytes // per_image_bytes))
    while B % bt:
        bt -= 1
    return bt


def _pick_hw_tile(HW, C, itemsize, max_block_bytes):
    """Largest lane-dense spatial tile (multiple of 128, or full HW) under budget."""
    budget_cols = max(128, max_block_bytes // (C * itemsize))
    if HW <= budget_cols:
        return HW
    best = 0
    i = 1
    while i * i <= HW:  # prefer exact divisors -> no ragged tail at all
        if HW % i == 0:
            for d in (i, HW // i):
                if d % 128 == 0 and d <= budget_cols and d > best:
                    best = d
        i += 1
    if best:
        return best
    # No clean multiple-of-128 divisor: largest multiple of 128 under budget;
    # the grid uses cdiv and the ragged tail is masked (keeps the VMEM bound).
    return (budget_cols // 128) * 128


def _maybe_buffered_spec(block_shape, index_map, lane_tile):
    """Deepen pipelining for small streaming tiles (hides exposed DMA latency)."""
    if lane_tile <= 256:
        try:
            return pl.BlockSpec(block_shape, index_map, pipeline_mode=pl.Buffered(3))
        except TypeError:  # older BlockSpec signature without pipeline_mode
            pass
    return pl.BlockSpec(block_shape, index_map)


# ------------------------------- wrapper ------------------------------------

def se_layer(x, w1, w2, *, max_block_bytes=None, donate_x=False):
    """x: (B, C, H, W); w1: (C//r, C); w2: (C, C//r). Returns (B, C, H, W)."""
    B, C, H, W = x.shape
    Cr = w1.shape[0]
    HW = H * W
    itemsize = x.dtype.itemsize

    vmem_cap = _tpu_vmem_capacity_bytes()
    if max_block_bytes is None:
        # ~21 MiB blocks on 128-MiB-VMEM chips (v5e/v6e), ~10.6 MiB on 64-MiB v7x.
        max_block_bytes = max(4 << 20, min(vmem_cap // 6, 24 << 20))

    x_flat = x.reshape(B, C, HW)
    # Fold the 1/HW mean-pool scale into the tiny first linear; keep weights f32.
    w1t = (w1.T / float(HW)).astype(jnp.float32)             # (C, Cr)
    w2t = w2.T.astype(jnp.float32)                           # (Cr, C)
    w_bytes = (w1t.size + w2t.size) * 4

    alias = {0: 0} if donate_x else {}   # optional: reuse x's HBM for the output

    per_image_bytes = C * HW * itemsize
    bt = _pick_batch_tile(B, per_image_bytes, max_block_bytes)

    if bt is not None:
        # ------------- single pass: (bt, C, HW) block per grid step -------------
        # NOTE: for B == 1 on v7x the single "parallel" axis has extent 1 so one
        # TensorCore idles; a C/HW split would need a cross-block gate exchange.
        block_bytes = bt * per_image_bytes
        out_flat = pl.pallas_call(
            _se_single_pass_kernel,
            out_shape=jax.ShapeDtypeStruct((B, C, HW), x.dtype),
            grid_spec=pltpu.PrefetchScalarGridSpec(
                num_scalar_prefetch=0,
                grid=(B // bt,),
                in_specs=[
                    pl.BlockSpec((bt, C, HW), lambda b: (b, 0, 0)),
                    pl.BlockSpec((C, Cr), lambda b: (0, 0)),
                    pl.BlockSpec((Cr, C), lambda b: (0, 0)),
                ],
                out_specs=pl.BlockSpec((bt, C, HW), lambda b: (b, 0, 0)),
            ),
            compiler_params=pltpu.CompilerParams(
                dimension_semantics=("parallel",),
                vmem_limit_bytes=_vmem_limit_bytes(vmem_cap, 4 * block_bytes + w_bytes)),
            cost_estimate=pl.CostEstimate(
                flops=2 * B * C * HW + 4 * B * C * Cr,
                transcendentals=B * C,
                bytes_accessed=2 * x_flat.nbytes + w_bytes),
            input_output_aliases=alias,
        )(x_flat, w1t, w2t)
        return out_flat.reshape(B, C, H, W)

    # ---------- two-phase fallback: one image exceeds the block budget ----------
    hw_tile = _pick_hw_tile(HW, C, itemsize, max_block_bytes)
    nt = _cdiv(HW, hw_tile)
    # Phase 1 only multi-buffers its input (its output is a (1, C, 1) sliver),
    # so give it a ~2x larger tile: fewer grid steps, longer DMAs.
    hw_tile1 = _pick_hw_tile(HW, C, itemsize, min(2 * max_block_bytes, vmem_cap // 4))
    nt1 = _cdiv(HW, hw_tile1)

    pool_kernel = functools.partial(
        _se_pool_gate_kernel,
        hw_total=HW, hw_tile=hw_tile1, needs_mask=(HW % hw_tile1) != 0)

    block1_bytes = C * hw_tile1 * itemsize
    gate = pl.pallas_call(
        pool_kernel,
        out_shape=jax.ShapeDtypeStruct((B, C, 1), jnp.float32),
        grid_spec=pltpu.PrefetchScalarGridSpec(
            num_scalar_prefetch=0,
            grid=(B, nt1),
            in_specs=[
                _maybe_buffered_spec((1, C, hw_tile1), lambda b, t: (b, 0, t), hw_tile1),
                pl.BlockSpec((C, Cr), lambda b, t: (0, 0)),
                pl.BlockSpec((Cr, C), lambda b, t: (0, 0)),
            ],
            out_specs=pl.BlockSpec((1, C, 1), lambda b, t: (b, 0, 0)),
            scratch_shapes=[pltpu.VMEM((1, C), jnp.float32)],
        ),
        compiler_params=pltpu.CompilerParams(
            dimension_semantics=("parallel", "arbitrary"),
            vmem_limit_bytes=_vmem_limit_bytes(vmem_cap, 3 * block1_bytes + w_bytes)),
        cost_estimate=pl.CostEstimate(
            flops=B * C * HW + 4 * B * C * Cr,
            transcendentals=B * C,
            bytes_accessed=x_flat.nbytes + w_bytes + B * C * 4),
    )(x_flat, w1t, w2t)

    block2_bytes = C * hw_tile * itemsize
    out_flat = pl.pallas_call(
        _se_scale_kernel,
        out_shape=jax.ShapeDtypeStruct((B, C, HW), x.dtype),
        grid_spec=pltpu.PrefetchScalarGridSpec(
            num_scalar_prefetch=0,
            grid=(B, nt),
            in_specs=[
                _maybe_buffered_spec((1, C, hw_tile), lambda b, t: (b, 0, t), hw_tile),
                pl.BlockSpec((1, C, 1), lambda b, t: (b, 0, 0)),
            ],
            out_specs=pl.BlockSpec((1, C, hw_tile), lambda b, t: (b, 0, t)),
        ),
        compiler_params=pltpu.CompilerParams(
            dimension_semantics=("parallel", "parallel"),
            vmem_limit_bytes=_vmem_limit_bytes(vmem_cap, 4 * block2_bytes + B * C * 4)),
        cost_estimate=pl.CostEstimate(
            flops=B * C * HW,
            transcendentals=0,
            bytes_accessed=2 * x_flat.nbytes + B * C * 4),
        input_output_aliases=alias,
    )(x_flat, gate)
    return out_flat.reshape(B, C, H, W)


def se_layer_ref(x, w1, w2):
    """Pure-JAX reference mirroring the PyTorch module."""
    y = jnp.mean(x.astype(jnp.float32), axis=(2, 3))          # (B, C)
    h = jnp.maximum(y @ w1.T.astype(jnp.float32), 0.0)        # (B, C//r)
    s = jax.nn.sigmoid(h @ w2.T.astype(jnp.float32))          # (B, C)
    return (x * s[:, :, None, None]).astype(x.dtype)


if __name__ == "__main__":
    # Small shapes consistent with the module: channel=32, reduction=16 -> hidden=2
    B, C, H, W = 2, 32, 16, 16
    reduction = 16
    Cr = C // reduction

    key = jax.random.PRNGKey(0)
    kx, k1, k2 = jax.random.split(key, 3)

    x = jax.random.normal(kx, (B, C, H, W), dtype=jnp.float32)

    # Deterministic init mimicking nn.Linear default (uniform in +/- 1/sqrt(fan_in))
    bound1 = 1.0 / (C ** 0.5)
    bound2 = 1.0 / (Cr ** 0.5)
    w1 = jax.random.uniform(k1, (Cr, C), jnp.float32, -bound1, bound1)   # Linear(C -> C//r)
    w2 = jax.random.uniform(k2, (C, Cr), jnp.float32, -bound2, bound2)   # Linear(C//r -> C)

    ref = se_layer_ref(x, w1, w2)

    # Path 1: single pass, batched blocks (generation-aware default budget).
    out = jax.block_until_ready(se_layer(x, w1, w2))
    assert out.shape == (B, C, H, W)
    assert jnp.allclose(out, ref, atol=1e-5, rtol=1e-5)

    # Path 2: force the two-phase HW-tiled fallback (exact-divisor 128 tile).
    small_budget = C * 128 * x.dtype.itemsize
    out_tiled = jax.block_until_ready(se_layer(x, w1, w2, max_block_bytes=small_budget))
    assert jnp.allclose(out_tiled, ref, atol=1e-5, rtol=1e-5)

    # Path 3: awkward spatial size (HW = 320, not a multiple of 128) -> masked tail.
    x2 = jax.random.normal(kx, (B, C, 16, 20), dtype=jnp.float32)
    ref2 = se_layer_ref(x2, w1, w2)
    out_ragged = jax.block_until_ready(
        se_layer(x2, w1, w2, max_block_bytes=C * 128 * x2.dtype.itemsize))
    assert jnp.allclose(out_ragged, ref2, atol=1e-5, rtol=1e-5)

    # Path 4: bf16 inputs exercise the fused f32-accumulator reduce + f32-gate scale.
    x_bf = x.astype(jnp.bfloat16)
    ref_bf = se_layer_ref(x_bf.astype(jnp.float32), w1, w2)
    out_bf = jax.block_until_ready(se_layer(x_bf, w1, w2))
    assert jnp.allclose(out_bf.astype(jnp.float32), ref_bf, atol=5e-2, rtol=5e-2)

    print("KERNEL_OK")
</pallas_src>

<mosaic_0001>
module attributes {stable_mosaic.version = 11 : i64} {
  func.func @_se_single_pass_kernel(%arg0: i32, %arg1: memref<2x32x256xf32, #tpu.memory_space<vmem>>, %arg2: memref<32x2xf32, #tpu.memory_space<vmem>>, %arg3: memref<2x32xf32, #tpu.memory_space<vmem>>, %arg4: memref<2x32x256xf32, #tpu.memory_space<vmem>>) attributes {dimension_semantics = [#tpu.dimension_semantics<parallel>], iteration_bounds = array<i64: 1>, scalar_prefetch = 0 : i64, scratch_operands = 0 : i64, tpu.core_type = #tpu.core_type<tc>, window_params = [{transform_indices = @transform_0, window_bounds = array<i64: 2, 32, 256>}, {pipeline_mode = #tpu.pipeline_mode<synchronous>, transform_indices = @transform_1, window_bounds = array<i64: 32, 2>}, {pipeline_mode = #tpu.pipeline_mode<synchronous>, transform_indices = @transform_2, window_bounds = array<i64: 2, 32>}, {transform_indices = @transform_3, window_bounds = array<i64: 2, 32, 256>}]} {
    %c0 = arith.constant 0 : index
    %c0_0 = arith.constant 0 : index
    %c0_1 = arith.constant 0 : index
    %0 = vector.load %arg1[%c0, %c0_0, %c0_1] : memref<2x32x256xf32, #tpu.memory_space<vmem>>, vector<2x32x256xf32>
    %cst = arith.constant dense<0.000000e+00> : vector<2x32xf32>
    %1 = vector.multi_reduction <add>, %0, %cst [2] : vector<2x32x256xf32> to vector<2x32xf32>
    %c0_2 = arith.constant 0 : index
    %c0_3 = arith.constant 0 : index
    %2 = vector.load %arg2[%c0_2, %c0_3] : memref<32x2xf32, #tpu.memory_space<vmem>>, vector<32x2xf32>
    %cst_4 = arith.constant dense<0.000000e+00> : vector<2x2xf32>
    %3 = tpu.matmul %1, %2, %cst_4 {dimension_numbers = #tpu.dot_dimension_numbers<[1], [0], [0], [1], [0, 0, 1, 1], [], []>} : vector<2x32xf32>, vector<32x2xf32>, vector<2x2xf32> -> vector<2x2xf32>
    %cst_5 = arith.constant 0.000000e+00 : f32
    %4 = vector.broadcast %cst_5 : f32 to vector<2x2xf32>
    %5 = arith.maximumf %3, %4 : vector<2x2xf32>
    %c0_6 = arith.constant 0 : index
    %c0_7 = arith.constant 0 : index
    %6 = vector.load %arg3[%c0_6, %c0_7] : memref<2x32xf32, #tpu.memory_space<vmem>>, vector<2x32xf32>
    %cst_8 = arith.constant dense<0.000000e+00> : vector<2x32xf32>
    %7 = tpu.matmul %5, %6, %cst_8 {dimension_numbers = #tpu.dot_dimension_numbers<[1], [0], [0], [1], [0, 0, 1, 1], [], []>} : vector<2x2xf32>, vector<2x32xf32>, vector<2x32xf32> -> vector<2x32xf32>
    %8 = arith.negf %7 : vector<2x32xf32>
    %9 = math.exp %8 : vector<2x32xf32>
    %cst_9 = arith.constant 1.000000e+00 : f32
    %10 = vector.broadcast %cst_9 : f32 to vector<2x32xf32>
    %11 = arith.addf %10, %9 : vector<2x32xf32>
    %12 = arith.divf %10, %11 : vector<2x32xf32>
    %c0_10 = arith.constant 0 : index
    %c0_11 = arith.constant 0 : index
    %c0_12 = arith.constant 0 : index
    %13 = vector.load %arg1[%c0_10, %c0_11, %c0_12] : memref<2x32x256xf32, #tpu.memory_space<vmem>>, vector<2x32x256xf32>
    %14 = vector.shape_cast %12 : vector<2x32xf32> to vector<2x32x1xf32>
    %15 = vector.broadcast %14 : vector<2x32x1xf32> to vector<2x32x256xf32>
    %16 = arith.mulf %13, %15 : vector<2x32x256xf32>
    %c0_13 = arith.constant 0 : index
    %c0_14 = arith.constant 0 : index
    %c0_15 = arith.constant 0 : index
    %17 = vector.load %arg4[%c0_13, %c0_14, %c0_15] : memref<2x32x256xf32, #tpu.memory_space<vmem>>, vector<2x32x256xf32>
    tpu.vector_store %arg4[%c0_13, %c0_14, %c0_15], %16 {strides = array<i32>} : memref<2x32x256xf32, #tpu.memory_space<vmem>>, vector<2x32x256xf32>,
    return
  }
  func.func @transform_0(%arg0: i32) -> (i32, i32, i32) {
    %c0_i32 = arith.constant 0 : i32
    %c0_i32_0 = arith.constant 0 : i32
    %c0_i32_1 = arith.constant 0 : i32
    return %arg0, %c0_i32, %c0_i32_0 : i32, i32, i32
  }
  func.func @transform_1(%arg0: i32) -> (i32, i32) {
    %c0_i32 = arith.constant 0 : i32
    %c0_i32_0 = arith.constant 0 : i32
    %c0_i32_1 = arith.constant 0 : i32
    return %c0_i32, %c0_i32_0 : i32, i32
  }
  func.func @transform_2(%arg0: i32) -> (i32, i32) {
    %c0_i32 = arith.constant 0 : i32
    %c0_i32_0 = arith.constant 0 : i32
    %c0_i32_1 = arith.constant 0 : i32
    return %c0_i32, %c0_i32_0 : i32, i32
  }
  func.func @transform_3(%arg0: i32) -> (i32, i32, i32) {
    %c0_i32 = arith.constant 0 : i32
    %c0_i32_0 = arith.constant 0 : i32
    %c0_i32_1 = arith.constant 0 : i32
    return %arg0, %c0_i32, %c0_i32_0 : i32, i32, i32
  }
}

</mosaic_0001>

<llo_original>
// kernel: tpu_custom_call.1
$region0: #{tpu_custom_call.1}
  #allocation0 [shape = 'u32[]', space=smem, size = 0x4, offset = 0x4, fixed_abs, tag = 'smem constant byte address 0x4 - core index']
  #allocation1 [shape = 'u32[144,128]{1,0:T(1,128)}', space=vmem, size = 0x12000, scoped, tag = 'internal scratch']
  %s0 = inlined_call_operand.hbm [shape: f32[2,32,256], index: 0, kind: input, shape index: {}]
  %s1 = inlined_call_operand.vmem [shape: f32[32,2], index: 1, kind: input, shape index: {}]
  %s2 = inlined_call_operand.vmem [shape: f32[2,32], index: 2, kind: input, shape index: {}]
  %s3 = inlined_call_operand.hbm [shape: f32[2,32,256], index: 3, kind: output, shape index: {}]
  %s4 = sld [smem:[#allocation0]]
  $region26: #{tpu_custom_call.1} parent=0
    _
  %s6 = ssub.s32 1, %s4
  %s7 = scalar_select 0, %s6, %s4
  $region1: #{tpu_custom_call.1} parent=0
    #allocation2 [shape = 'u8[65536]{0}', space=vmem, size = 0x10000, scoped, tag = 'input window, operand 0, single buffered']
    #allocation3 [shape = 's32[1]{0}', space=sflag, size = 0x4, scoped, tag = 'scoped memory for tpu_custom_call.1']
    #allocation4 [shape = 's32[1]{0}', space=sflag, size = 0x4, scoped, tag = 'scoped memory for tpu_custom_call.1']
    #allocation5 [shape = 'u8[65536]{0}', space=vmem, size = 0x10000, scoped, tag = 'output window, operand 0, single buffered']
    %8 = vsyncpa [#allocation3], 0
    %9 = vsyncpa [#allocation4], 0
    // Predicated region
    $region2: #{tpu_custom_call.1} parent=1 // pred_check
      _
    $region3: #{tpu_custom_call.1} parent=1 // pred_check_branch
      %11 = sbr.rel (0) target = $region5
    $region4: #{tpu_custom_call.1} parent=1 // pred_region
      %s13 = ssub.s32 2048, 2048
      %14 = vsyncadd [#allocation3], %s13
      %s15 = sshll.u32 [#allocation2], 4
      %s16 = int_to_ptr.vmem [resolvable:$true] %s15
      %21 = dma.hbm_to_vmem [thread:$0]  %s0, 2048, %s16, [#allocation3], 256, 256, 16
    $region5: #{tpu_custom_call.1} parent=1 // pred_fallthru
      _
    // Predicated region
    $region6: #{tpu_custom_call.1} parent=1 // pred_check
      _
    $region7: #{tpu_custom_call.1} parent=1 // pred_check_branch
      %23 = sbr.rel (0) target = $region9
    $region8: #{tpu_custom_call.1} parent=1 // pred_region
      _
    $region9: #{tpu_custom_call.1} parent=1 // pred_fallthru
      _
    // Predicated region
    $region10: #{tpu_custom_call.1} parent=1 // pred_check
      _
    $region11: #{tpu_custom_call.1} parent=1 // pred_check_branch
      %25 = sbr.rel (0) target = $region13
    $region12: #{tpu_custom_call.1} parent=1 // pred_region
      _
    $region13: #{tpu_custom_call.1} parent=1 // pred_fallthru
      _
    // Predicated region
    $region14: #{tpu_custom_call.1} parent=1 // pred_check
      _
    $region15: #{tpu_custom_call.1} parent=1 // pred_check_branch
      %27 = sbr.rel (0) target = $region17
    $region16: #{tpu_custom_call.1} parent=1 // pred_region
      %28 = dma.done [#allocation3], 2048
    $region17: #{tpu_custom_call.1} parent=1 // pred_fallthru
      _
    %v29 = vld [vmem:[#allocation2] sm:$0xff]
    %v30 = vld [vmem:[#allocation2 + $0x8] sm:$0xff]
    %v31 = vld [vmem:[#allocation2 + $0x10] sm:$0xff]
    %v32 = vld [vmem:[#allocation2 + $0x18] sm:$0xff]
    %v33 = vld [vmem:[#allocation2 + $0x20] sm:$0xff]
    %v34 = vld [vmem:[#allocation2 + $0x28] sm:$0xff]
    %v35 = vld [vmem:[#allocation2 + $0x30] sm:$0xff]
    %v36 = vld [vmem:[#allocation2 + $0x38] sm:$0xff]
    %v37 = vld [vmem:[#allocation2 + $0x40] sm:$0xff]
    %v38 = vld [vmem:[#allocation2 + $0x48] sm:$0xff]
    %v39 = vld [vmem:[#allocation2 + $0x50] sm:$0xff]
    %v40 = vld [vmem:[#allocation2 + $0x58] sm:$0xff]
    %v41 = vld [vmem:[#allocation2 + $0x60] sm:$0xff]
    %v42 = vld [vmem:[#allocation2 + $0x68] sm:$0xff]
    %v43 = vld [vmem:[#allocation2 + $0x70] sm:$0xff]
    %v44 = vld [vmem:[#allocation2 + $0x78] sm:$0xff]
    %v45 = vadd.f32 %v29, %v30
    %46 = vadd.xlane.f32.xlu0 %v45
    %v47 = vpop.xlane.xlu0 %46
    %v48 = vadd.f32 %v31, %v32
    %49 = vadd.xlane.f32.xlu0 %v48
    %v50 = vpop.xlane.xlu0 %49
    %v51 = vadd.f32 %v33, %v34
    %52 = vadd.xlane.f32.xlu0 %v51
    %v53 = vpop.xlane.xlu0 %52
    %v54 = vadd.f32 %v35, %v36
    %55 = vadd.xlane.f32.xlu0 %v54
    %v56 = vpop.xlane.xlu0 %55
    %v57 = vadd.f32 %v37, %v38
    %58 = vadd.xlane.f32.xlu0 %v57
    %v59 = vpop.xlane.xlu0 %58
    %v60 = vadd.f32 %v39, %v40
    %61 = vadd.xlane.f32.xlu0 %v60
    %v62 = vpop.xlane.xlu0 %61
    %v63 = vadd.f32 %v41, %v42
    %64 = vadd.xlane.f32.xlu0 %v63
    %v65 = vpop.xlane.xlu0 %64
    %v66 = vadd.f32 %v43, %v44
    %67 = vadd.xlane.f32.xlu0 %v66
    %v68 = vpop.xlane.xlu0 %67
    %v69 = vld [vmem:[%s1] sm:$0xff]
    %v70 = vld [vmem:[%s1 + $0x8] sm:$0xff]
    %v71 = vld [vmem:[%s1 + $0x10] sm:$0xff]
    %v72 = vld [vmem:[%s1 + $0x18] sm:$0xff]
    %v81 = vlaneseq
    %v82 = vand.u32 %v81, 127
    %v83 = vlaneseq
    %v84 = vshrl.u32 %v83, 7
    %v85 = vsub.s32 %v82, %v84
    %v86 = vrot.slane %v47, %v85
    %v87 = vadd.s32 %v82, 4294967288
    %v88 = vlaneseq
    %v89 = vshrl.u32 %v88, 7
    %v90 = vsub.s32 %v87, %v89
    %v91 = vrot.slane %v50, %v90
    %vm92 = vcmask 130112
    %v93 = vsel %vm92, %v91, %v86
    %v94 = vadd.s32 %v82, 4294967280
    %v95 = vlaneseq
    %v96 = vshrl.u32 %v95, 7
    %v97 = vsub.s32 %v94, %v96
    %v98 = vrot.slane %v53, %v97
    %vm99 = vcmask 195712
    %v100 = vsel %vm99, %v98, %v93
    %v101 = vadd.s32 %v82, 4294967272
    %v102 = vlaneseq
    %v103 = vshrl.u32 %v102, 7
    %v104 = vsub.s32 %v101, %v103
    %v105 = vrot.slane %v56, %v104
    %vm106 = vcmask 261312
    %v107 = vsel %vm106, %v105, %v100
    %v108 = vlaneseq
    %v109 = vshrl.u32 %v108, 7
    %v110 = vsub.s32 %v82, %v109
    %v111 = vrot.slane %v59, %v110
    %v112 = vlaneseq
    %v113 = vshrl.u32 %v112, 7
    %v114 = vsub.s32 %v87, %v113
    %v115 = vrot.slane %v62, %v114
    %v116 = vsel %vm92, %v115, %v111
    %v117 = vlaneseq
    %v118 = vshrl.u32 %v117, 7
    %v119 = vsub.s32 %v94, %v118
    %v120 = vrot.slane %v65, %v119
    %v121 = vsel %vm99, %v120, %v116
    %v122 = vlaneseq
    %v123 = vshrl.u32 %v122, 7
    %v124 = vsub.s32 %v101, %v123
    %v125 = vrot.slane %v68, %v124
    %v126 = vsel %vm106, %v125, %v121
    %vm127 = vcmask 1041409
    %v128 = vsel %vm127, %v126, %v107
    %vm129 = vcmask 261120
    %v130 = vsel %vm129, %v128, 0
    %132 = vmatprep.subr.mxu0 0.0
    %133 = vmatpush1.msra.mxu0 %v69
    %134 = vmatprep.subr.mxu0 0.0
    %135 = vmatpush1.msra.mxu0 %v70
    %136 = vmatprep.subr.mxu0 0.0
    %137 = vmatpush1.msra.mxu0 %v71
    %138 = vmatprep.subr.mxu0 0.0
    %139 = vmatpush1.msra.mxu0 %v72
    %140 = vmatprep.subr.mxu0 0.0
    %141 = vmatpush1.msra.mxu0 0.0
    %142 = vmatprep.subr.mxu0 0.0
    %143 = vmatpush1.msra.mxu0 0.0
    %144 = vmatprep.subr.mxu0 0.0
    %145 = vmatpush1.msra.mxu0 0.0
    %146 = vmatprep.subr.mxu0 0.0
    %147 = vmatpush1.msra.mxu0 0.0
    %148 = vmatprep.subr.mxu0 0.0
    %149 = vmatpush1.msra.mxu0 0.0
    %150 = vmatprep.subr.mxu0 0.0
    %151 = vmatpush1.msra.mxu0 0.0
    %152 = vmatprep.subr.mxu0 0.0
    %153 = vmatpush1.msra.mxu0 0.0
    %154 = vmatprep.subr.mxu0 0.0
    %155 = vmatpush1.msra.mxu0 0.0
    %156 = vmatprep.subr.mxu0 0.0
    %157 = vmatpush1.msra.mxu0 0.0
    %158 = vmatprep.subr.mxu0 0.0
    %159 = vmatpush1.msra.mxu0 0.0
    %160 = vmatprep.subr.mxu0 0.0
    %161 = vmatpush1.msra.mxu0 0.0
    %162 = vmatprep.subr.mxu0 0.0
    %163 = vmatpush1.msra.mxu0 0.0
    %164 = vmatprep.subr.mxu0 0.0
    %165 = vmatpush1.msra.mxu0 0.0
    %166 = vmatprep.subr.mxu0 0.0
    %167 = vmatpush1.msra.mxu0 0.0
    %168 = vmatprep.subr.mxu0 0.0
    %169 = vmatpush1.msra.mxu0 0.0
    %170 = vmatprep.subr.mxu0 0.0
    %171 = vmatpush1.msra.mxu0 0.0
    %172 = vmatprep.subr.mxu0 0.0
    %173 = vmatpush1.msra.mxu0 0.0
    %174 = vmatprep.subr.mxu0 0.0
    %175 = vmatpush1.msra.mxu0 0.0
    %176 = vmatprep.subr.mxu0 0.0
    %177 = vmatpush1.msra.mxu0 0.0
    %178 = vmatprep.subr.mxu0 0.0
    %179 = vmatpush1.msra.mxu0 0.0
    %180 = vmatprep.subr.mxu0 0.0
    %181 = vmatpush1.msra.mxu0 0.0
    %182 = vmatprep.subr.mxu0 0.0
    %183 = vmatpush1.msra.mxu0 0.0
    %184 = vmatprep.subr.mxu0 0.0
    %185 = vmatpush1.msra.mxu0 0.0
    %186 = vmatprep.subr.mxu0 0.0
    %187 = vmatpush1.msra.mxu0 0.0
    %188 = vmatprep.subr.mxu0 0.0
    %189 = vmatpush1.msra.mxu0 0.0
    %190 = vmatprep.subr.mxu0 0.0
    %191 = vmatpush1.msra.mxu0 0.0
    %192 = vmatprep.subr.mxu0 0.0
    %193 = vmatpush1.msra.mxu0 0.0
    %194 = vmatprep.subr.mxu0 0.0
    %195 = vmatpush1.msra.mxu0 0.0
    %196 = vmatprep.mubr.f32.mxu0 0.0
    %197 = vmatmul.mubr.f32.gmra.mrb[0].mxu0 %v130
    %v198 = vpop.f32.mrb[0].mxu0
    %v199 = vadd.f32 0.0, %v198
    %v200 = vpop.f32.mrb[0].mxu0
    %201 = vdwg.mxu0
    %v202 = vmax.f32 %v199, 0.0
    %v203 = vld [vmem:[%s2] sm:$0x3]
    %vm204 = vcmask 15360
    %v206 = vsel %vm204, %v202, 0
    %vm208 = vcmask 1041408
    %v210 = vsel %vm208, %v203, 0
    %212 = vmatprep.subr.mxu0 0.0
    %213 = vmatpush1.msra.mxu0 %v210
    %214 = vmatprep.subr.mxu0 0.0
    %215 = vmatpush1.msra.mxu0 0.0
    %216 = vmatprep.subr.mxu0 0.0
    %217 = vmatpush1.msra.mxu0 0.0
    %218 = vmatprep.subr.mxu0 0.0
    %219 = vmatpush1.msra.mxu0 0.0
    %220 = vmatprep.subr.mxu0 0.0
    %221 = vmatpush1.msra.mxu0 0.0
    %222 = vmatprep.subr.mxu0 0.0
    %223 = vmatpush1.msra.mxu0 0.0
    %224 = vmatprep.subr.mxu0 0.0
    %225 = vmatpush1.msra.mxu0 0.0
    %226 = vmatprep.subr.mxu0 0.0
    %227 = vmatpush1.msra.mxu0 0.0
    %228 = vmatprep.subr.mxu0 0.0
    %229 = vmatpush1.msra.mxu0 0.0
    %230 = vmatprep.subr.mxu0 0.0
    %231 = vmatpush1.msra.mxu0 0.0
    %232 = vmatprep.subr.mxu0 0.0
    %233 = vmatpush1.msra.mxu0 0.0
    %234 = vmatprep.subr.mxu0 0.0
    %235 = vmatpush1.msra.mxu0 0.0
    %236 = vmatprep.subr.mxu0 0.0
    %237 = vmatpush1.msra.mxu0 0.0
    %238 = vmatprep.subr.mxu0 0.0
    %239 = vmatpush1.msra.mxu0 0.0
    %240 = vmatprep.subr.mxu0 0.0
    %241 = vmatpush1.msra.mxu0 0.0
    %242 = vmatprep.subr.mxu0 0.0
    %243 = vmatpush1.msra.mxu0 0.0
    %244 = vmatprep.subr.mxu0 0.0
    %245 = vmatpush1.msra.mxu0 0.0
    %246 = vmatprep.subr.mxu0 0.0
    %247 = vmatpush1.msra.mxu0 0.0
    %248 = vmatprep.subr.mxu0 0.0
    %249 = vmatpush1.msra.mxu0 0.0
    %250 = vmatprep.subr.mxu0 0.0
    %251 = vmatpush1.msra.mxu0 0.0
    %252 = vmatprep.subr.mxu0 0.0
    %253 = vmatpush1.msra.mxu0 0.0
    %254 = vmatprep.subr.mxu0 0.0
    %255 = vmatpush1.msra.mxu0 0.0
    %256 = vmatprep.subr.mxu0 0.0
    %257 = vmatpush1.msra.mxu0 0.0
    %258 = vmatprep.subr.mxu0 0.0
    %259 = vmatpush1.msra.mxu0 0.0
    %260 = vmatprep.subr.mxu0 0.0
    %261 = vmatpush1.msra.mxu0 0.0
    %262 = vmatprep.subr.mxu0 0.0
    %263 = vmatpush1.msra.mxu0 0.0
    %264 = vmatprep.subr.mxu0 0.0
    %265 = vmatpush1.msra.mxu0 0.0
    %266 = vmatprep.subr.mxu0 0.0
    %267 = vmatpush1.msra.mxu0 0.0
    %268 = vmatprep.subr.mxu0 0.0
    %269 = vmatpush1.msra.mxu0 0.0
    %270 = vmatprep.subr.mxu0 0.0
    %271 = vmatpush1.msra.mxu0 0.0
    %272 = vmatprep.subr.mxu0 0.0
    %273 = vmatpush1.msra.mxu0 0.0
    %274 = vmatprep.subr.mxu0 0.0
    %275 = vmatpush1.msra.mxu0 0.0
    %276 = vmatprep.mubr.f32.mxu0 0.0
    %277 = vmatmul.mubr.f32.gmra.mrb[0].mxu0 %v206
    %v278 = vpop.f32.mrb[0].mxu0
    %v279 = vadd.f32 0.0, %v278
    %v280 = vpop.f32.mrb[0].mxu0
    %281 = vdwg.mxu0
    %v282 = vxor.u32 %v279, 2147483648
    %v283 = vmul.f32 %v282, 1.442695
    %v284 = vpow.pop %v283
    %v285 = vadd.f32 %v284, 1.0
    %v286 = vrcp.pop %v285
    %v287 = vmul.f32 1.0, %v286
    %v288 = vlaneseq
    %v289 = vshrl.u32 %v288, 7
    %v290 = vsub.s32 0, %v289
    %v291 = vrot.slane %v287, %v290
    %293 = vbcast.lane.b32.xlu0 %v291, 256
    %v294 = vpop.permute.xlu0 %293
    %s296 = sor.u32 256, 8
    %297 = vbcast.lane.b32.xlu0 %v291, %s296
    %v298 = vpop.permute.xlu0 %297
    %s300 = sor.u32 256, 16
    %301 = vbcast.lane.b32.xlu0 %v291, %s300
    %v302 = vpop.permute.xlu0 %301
    %s304 = sor.u32 256, 24
    %305 = vbcast.lane.b32.xlu0 %v291, %s304
    %v306 = vpop.permute.xlu0 %305
    %v307 = vlaneseq
    %v308 = vshrl.u32 %v307, 7
    %v309 = vsub.s32 1, %v308
    %v310 = vrot.slane %v287, %v309
    %312 = vbcast.lane.b32.xlu0 %v310, 256
    %v313 = vpop.permute.xlu0 %312
    %s315 = sor.u32 256, 8
    %316 = vbcast.lane.b32.xlu0 %v310, %s315
    %v317 = vpop.permute.xlu0 %316
    %s319 = sor.u32 256, 16
    %320 = vbcast.lane.b32.xlu0 %v310, %s319
    %v321 = vpop.permute.xlu0 %320
    %s323 = sor.u32 256, 24
    %324 = vbcast.lane.b32.xlu0 %v310, %s323
    %v325 = vpop.permute.xlu0 %324
    %v326 = vmul.f32 %v29, %v294
    %v327 = vmul.f32 %v30, %v294
    %v328 = vmul.f32 %v31, %v298
    %v329 = vmul.f32 %v32, %v298
    %v330 = vmul.f32 %v33, %v302
    %v331 = vmul.f32 %v34, %v302
    %v332 = vmul.f32 %v35, %v306
    %v333 = vmul.f32 %v36, %v306
    %v334 = vmul.f32 %v37, %v313
    %v335 = vmul.f32 %v38, %v313
    %v336 = vmul.f32 %v39, %v317
    %v337 = vmul.f32 %v40, %v317
    %v338 = vmul.f32 %v41, %v321
    %v339 = vmul.f32 %v42, %v321
    %v340 = vmul.f32 %v43, %v325
    %v341 = vmul.f32 %v44, %v325
    %342 = vst [vmem:[#allocation5] sm:$0xff] %v326
    %343 = vst [vmem:[#allocation5 + $0x8] sm:$0xff] %v327
    %344 = vst [vmem:[#allocation5 + $0x10] sm:$0xff] %v328
    %345 = vst [vmem:[#allocation5 + $0x18] sm:$0xff] %v329
    %346 = vst [vmem:[#allocation5 + $0x20] sm:$0xff] %v330
    %347 = vst [vmem:[#allocation5 + $0x28] sm:$0xff] %v331
    %348 = vst [vmem:[#allocation5 + $0x30] sm:$0xff] %v332
    %349 = vst [vmem:[#allocation5 + $0x38] sm:$0xff] %v333
    %350 = vst [vmem:[#allocation5 + $0x40] sm:$0xff] %v334
    %351 = vst [vmem:[#allocation5 + $0x48] sm:$0xff] %v335
    %352 = vst [vmem:[#allocation5 + $0x50] sm:$0xff] %v336
    %353 = vst [vmem:[#allocation5 + $0x58] sm:$0xff] %v337
    %354 = vst [vmem:[#allocation5 + $0x60] sm:$0xff] %v338
    %355 = vst [vmem:[#allocation5 + $0x68] sm:$0xff] %v339
    %356 = vst [vmem:[#allocation5 + $0x70] sm:$0xff] %v340
    %357 = vst [vmem:[#allocation5 + $0x78] sm:$0xff] %v341
    // Predicated region
    $region18: #{tpu_custom_call.1} parent=1 // pred_check
      _
    $region19: #{tpu_custom_call.1} parent=1 // pred_check_branch
      %359 = sbr.rel (0) target = $region21
    $region20: #{tpu_custom_call.1} parent=1 // pred_region
      %s361 = ssub.s32 2048, 2048
      %362 = vsyncadd [#allocation4], %s361
      %s363 = sshll.u32 [#allocation5], 4
      %s364 = int_to_ptr.vmem [resolvable:$true] %s363
      %369 = dma.vmem_to_hbm [thread:$0]  %s364, 2048, %s3, [#allocation4], 256, 256, 16
    $region21: #{tpu_custom_call.1} parent=1 // pred_fallthru
      _
    // Predicated region
    $region22: #{tpu_custom_call.1} parent=1 // pred_check
      _
    $region23: #{tpu_custom_call.1} parent=1 // pred_check_branch
      %371 = sbr.rel (0) target = $region25
    $region24: #{tpu_custom_call.1} parent=1 // pred_region
      %372 = dma.done [#allocation4], 2048
    $region25: #{tpu_custom_call.1} parent=1 // pred_fallthru
      _
    %373 = vsyncpa [#allocation3], 1
    %374 = vsyncpa [#allocation4], 1

</llo_original>
